<compile_context>
chip_gen: v5e
topology: v5e:2x2
jax: 0.10.0
libtpu: 0.0.40
codegen_flags: <defaults>
</compile_context>

<pallas_src>
import jax
import jax.numpy as jnp
from jax.experimental import pallas as pl
from jax.experimental.pallas import tpu as pltpu


_EPS = 1e-12  # torch.nn.functional.normalize default eps


def _normalization_kernel(ab_ref, x_ref, o_ref):
    """One (batch, spatial-tile) block.

    ab_ref: (2,) f32 in SMEM -> [alpha, beta]
    x_ref : (1, C, TS) f32   -> channels on sublanes, spatial on lanes
    o_ref : (1, C, TS) f32
    """
    x = x_ref[0]                                            # (C, TS) f32
    ss = jnp.sum(x * x, axis=0, keepdims=True)              # (1, TS)  XLU reduce
    # 1 / max(||x||_2, eps)  ==  rsqrt(max(ss, eps^2))      EUP rsqrt
    inv = jax.lax.rsqrt(jnp.maximum(ss, _EPS * _EPS))
    o_ref[0] = x * (ab_ref[0] * inv) + ab_ref[1]            # scale + shift


def _pick_spatial_tile(hw, c):
    """Largest lane-dense tile (multiple of 128) dividing hw, ~4 MiB budget."""
    budget = 4 * 1024 * 1024
    for ts in (2048, 1024, 512, 256, 128):
        if hw % ts == 0 and c * ts * 4 <= budget:
            return ts
    # Fall back to the full spatial extent (block_shape == full dim is legal
    # even when not a multiple of 128).
    return hw


def normalization_forward(x, alpha, beta):
    """x: (N, C, ...) f32, normalize over dim=1; alpha/beta: shape (1,)."""
    orig_shape = x.shape
    N, C = orig_shape[0], orig_shape[1]
    HW = 1
    for d in orig_shape[2:]:
        HW *= d
    HW = max(HW, 1)

    ts = _pick_spatial_tile(HW, C)
    ab = jnp.concatenate([alpha.reshape(1), beta.reshape(1)]).astype(jnp.float32)
    x3 = x.reshape(N, C, HW).astype(jnp.float32)

    grid_spec = pltpu.PrefetchScalarGridSpec(
        num_scalar_prefetch=1,                               # ab -> SMEM
        grid=(N, HW // ts),
        in_specs=[pl.BlockSpec((1, C, ts), lambda n, s, ab: (n, 0, s))],
        out_specs=pl.BlockSpec((1, C, ts), lambda n, s, ab: (n, 0, s)),
    )

    out = pl.pallas_call(
        _normalization_kernel,
        out_shape=jax.ShapeDtypeStruct((N, C, HW), jnp.float32),
        grid_spec=grid_spec,
        compiler_params=pltpu.CompilerParams(
            dimension_semantics=("parallel", "parallel"),
            vmem_limit_bytes=64 * 1024 * 1024),
    )(ab, x3)

    return out.reshape(orig_shape)


def _ref_forward(x, alpha, beta):
    """Pure-JAX reference of the PyTorch module (F.normalize semantics)."""
    nrm = jnp.sqrt(jnp.sum(x * x, axis=1, keepdims=True))
    x = x / jnp.maximum(nrm, _EPS)
    return x * alpha + beta


if __name__ == "__main__":
    key = jax.random.PRNGKey(0)
    kx, _ = jax.random.split(key)

    # Small shapes consistent with the module: NCHW, normalize over C (dim=1).
    N, C, H, W = 2, 4, 16, 16
    x = jax.random.normal(kx, (N, C, H, W), jnp.float32)
    # Non-default parameter values so the scale/shift path is actually tested
    # (module inits alpha=1, beta=0).
    alpha = jnp.asarray([1.37], jnp.float32)
    beta = jnp.asarray([-0.21], jnp.float32)

    fwd = jax.jit(normalization_forward)
    out = fwd(x, alpha, beta)
    jax.block_until_ready(out)

    assert out.shape == x.shape, out.shape
    assert bool(jnp.all(jnp.isfinite(out)))

    ref = jax.jit(_ref_forward)(x, alpha, beta)
    err = float(jnp.max(jnp.abs(out - ref)))
    assert err < 1e-5, f"max |pallas - ref| = {err}"

    print("KERNEL_OK")
</pallas_src>

<mosaic_0001>
module attributes {stable_mosaic.version = 11 : i64} {
  func.func @_normalization_kernel(%arg0: i32, %arg1: i32, %arg2: memref<2xf32, #tpu.memory_space<smem>>, %arg3: memref<1x4x256xf32, #tpu.memory_space<vmem>>, %arg4: memref<1x4x256xf32, #tpu.memory_space<vmem>>) attributes {dimension_semantics = [#tpu.dimension_semantics<parallel>, #tpu.dimension_semantics<parallel>], iteration_bounds = array<i64: 2, 1>, scalar_prefetch = 1 : i64, scratch_operands = 0 : i64, tpu.core_type = #tpu.core_type<tc>, window_params = [{transform_indices = @transform_0, window_bounds = array<i64: 1, 4, 256>}, {transform_indices = @transform_1, window_bounds = array<i64: 1, 4, 256>}]} {
    %c0 = arith.constant 0 : index
    %c0_0 = arith.constant 0 : index
    %c0_1 = arith.constant 0 : index
    %0 = vector.load %arg3[%c0, %c0_0, %c0_1] : memref<1x4x256xf32, #tpu.memory_space<vmem>>, vector<1x4x256xf32>
    %1 = vector.shape_cast %0 : vector<1x4x256xf32> to vector<4x256xf32>
    %2 = arith.mulf %1, %1 : vector<4x256xf32>
    %cst = arith.constant dense<0.000000e+00> : vector<256xf32>
    %3 = vector.multi_reduction <add>, %2, %cst [0] : vector<4x256xf32> to vector<256xf32>
    %4 = vector.shape_cast %3 : vector<256xf32> to vector<1x256xf32>
    %cst_2 = arith.constant 1.000000e-24 : f32
    %5 = vector.broadcast %cst_2 : f32 to vector<1x256xf32>
    %6 = arith.maximumf %4, %5 : vector<1x256xf32>
    %7 = math.rsqrt %6 : vector<1x256xf32>
    %c0_3 = arith.constant 0 : index
    %8 = memref.load %arg2[%c0_3] : memref<2xf32, #tpu.memory_space<smem>>
    %9 = vector.broadcast %8 : f32 to vector<1x256xf32>
    %10 = arith.mulf %9, %7 : vector<1x256xf32>
    %11 = vector.broadcast %10 : vector<1x256xf32> to vector<4x256xf32>
    %12 = arith.mulf %1, %11 : vector<4x256xf32>
    %c1 = arith.constant 1 : index
    %13 = memref.load %arg2[%c1] : memref<2xf32, #tpu.memory_space<smem>>
    %14 = vector.broadcast %13 : f32 to vector<4x256xf32>
    %15 = arith.addf %12, %14 : vector<4x256xf32>
    %c0_4 = arith.constant 0 : index
    %c0_5 = arith.constant 0 : index
    %c0_6 = arith.constant 0 : index
    %16 = vector.load %arg4[%c0_4, %c0_5, %c0_6] : memref<1x4x256xf32, #tpu.memory_space<vmem>>, vector<1x4x256xf32>
    %17 = vector.shape_cast %16 : vector<1x4x256xf32> to vector<4x256xf32>
    %18 = vector.shape_cast %15 : vector<4x256xf32> to vector<1x4x256xf32>
    tpu.vector_store %arg4[%c0_4, %c0_5, %c0_6], %18 {strides = array<i32>} : memref<1x4x256xf32, #tpu.memory_space<vmem>>, vector<1x4x256xf32>,
    return
  }
  func.func @transform_0(%arg0: i32, %arg1: i32, %arg2: memref<2xf32, #tpu.memory_space<smem>>) -> (i32, i32, i32) {
    %c0_i32 = arith.constant 0 : i32
    %c0_i32_0 = arith.constant 0 : i32
    return %arg0, %c0_i32, %arg1 : i32, i32, i32
  }
  func.func @transform_1(%arg0: i32, %arg1: i32, %arg2: memref<2xf32, #tpu.memory_space<smem>>) -> (i32, i32, i32) {
    %c0_i32 = arith.constant 0 : i32
    %c0_i32_0 = arith.constant 0 : i32
    return %arg0, %c0_i32, %arg1 : i32, i32, i32
  }
}

</mosaic_0001>

<llo_original>
// kernel: normalization_forward.1
$region0: #{normalization_forward.1}
  #allocation0 [shape = 'u32[]', space=smem, size = 0x4, offset = 0x4, fixed_abs, tag = 'smem constant byte address 0x4 - core index']
  #allocation1 [shape = 'u32[72,128]{1,0:T(1,128)}', space=vmem, size = 0x9000, scoped, tag = 'internal scratch']
  #allocation2 [shape = 's32[1]{0}', space=sflag, size = 0x4, scoped, tag = 'scoped memory for normalization_forward.1']
  #allocation3 [shape = 'u8[512]{0}', space=smem, size = 0x200, scoped, tag = 'prefetched SMEM operand 0']
  %s0 = inlined_call_operand.vmem [shape: f32[2], index: 0, kind: input, shape index: {}]
  %s1 = inlined_call_operand.vmem [shape: f32[2,4,256], index: 1, kind: input, shape index: {}]
  %s2 = inlined_call_operand.vmem [shape: f32[2,4,256], index: 2, kind: output, shape index: {}]
  %s3 = sld [smem:[#allocation0]]
  $region37: #{normalization_forward.1} parent=0
    _
  %s5 = ssub.s32 1, %s3
  %s6 = scalar_select 0, %s5, %s3
  %s8 = sshll.u32 %s0, 4
  %s9 = int_to_ptr.vmem [resolvable:$true] %s8
  %11 = dma.vmem_to_smem %s9, 16, [#allocation3], [#allocation2]
  %13 = dma.done [#allocation2], 16
  %14 = sfence
  loop: start=0, step=1, limit=4
  $region2: #{normalization_forward.1} parent=0 // loop_pre_header
    _
  $region3: #{normalization_forward.1} parent=0 // loop_header
    %s16 = sphi 0, %s20
    %p17 = scmp.ge.s32.totalorder %s16, 4
    %s23 = sphi 0, %s35
    %s24 = sphi 0, %s31
    %s25 = sphi 0, %s23
    %s26 = sphi 0, %s24
    %s27 = sphi 0, %s25
    %s28 = sphi 0, %s26
    %s40 = sphi 0, %s42
    %s43 = sphi 0, %s40
    %s44 = sphi 0, %s43
    %s60 = sphi 0, %s44
    %s68 = sphi 0, %s70
    %s71 = sphi 0, %s68
    %s72 = sphi 0, %s71
    %s88 = sphi 0, %s72
  $region4: #{normalization_forward.1} parent=0 // loop_header_branch
    %19 = sbr.rel (%p17) target = $region8
  $region5: #{normalization_forward.1} parent=0 // loop_body
    %s21 = ssub.s32 %s16, 1
    %s22 = ssub.s32 %s16, 2
    %s29 = sadd.s32 1, %s24
    %p30 = scmp.ge.s32.totalorder %s29, 1
    %s31 = scalar_select %p30, 0, %s29
    %s32 = sadd.s32 1, %s23
    %s33 = scalar_select %p30, %s32, %s23
    %p34 = scmp.ge.s32.totalorder %s33, 2
    %s35 = scalar_select %p34, 0, %s33
    %s36 = ssub.s32 %s23, %s35
    %s37 = ssub.s32 %s24, %s31
    %s38 = sor.u32 %s36, %s37
    %p39 = scmp.eq.s32.totalorder %s38, 0
    %s41 = sadd.s32 %s40, 1
    %s42 = scalar_select %p39, %s40, %s41
    %p45 = pneg %p39
    %p46 = scmp.eq.s32.totalorder %s16, 1
    %p47 = por %p45, %p46
    %p48 = scmp.ne.s32.totalorder %s40, %s43
    %p49 = scmp.eq.s32.totalorder %s16, 0
    %p50 = por %p48, %p49
    %p51 = scmp.ne.s32.totalorder %s40, %s43
    %p52 = scmp.eq.s32.totalorder %s21, 1
    %p53 = por %p51, %p52
    %p54 = scmp.ne.s32.totalorder %s43, %s44
    %p55 = scmp.eq.s32.totalorder %s21, 0
    %p56 = por %p54, %p55
    %p57 = scmp.ne.s32.totalorder %s43, %s44
    %p58 = scmp.eq.s32.totalorder %s22, 1
    %p59 = por %p57, %p58
    %p61 = scmp.ne.s32.totalorder %s44, %s60
    %p62 = scmp.eq.s32.totalorder %s22, 0
    %p63 = por %p61, %p62
    %s64 = ssub.s32 %s23, %s35
    %s65 = ssub.s32 %s24, %s31
    %s66 = sor.u32 %s64, %s65
    %p67 = scmp.eq.s32.totalorder %s66, 0
    %s69 = sadd.s32 %s68, 1
    %s70 = scalar_select %p67, %s68, %s69
    %p73 = pneg %p67
    %p74 = scmp.eq.s32.totalorder %s16, 1
    %p75 = por %p73, %p74
    %p76 = scmp.ne.s32.totalorder %s68, %s71
    %p77 = scmp.eq.s32.totalorder %s16, 0
    %p78 = por %p76, %p77
    %p79 = scmp.ne.s32.totalorder %s68, %s71
    %p80 = scmp.eq.s32.totalorder %s21, 1
    %p81 = por %p79, %p80
    %p82 = scmp.ne.s32.totalorder %s71, %s72
    %p83 = scmp.eq.s32.totalorder %s21, 0
    %p84 = por %p82, %p83
    %p85 = scmp.ne.s32.totalorder %s71, %s72
    %p86 = scmp.eq.s32.totalorder %s22, 1
    %p87 = por %p85, %p86
    %p89 = scmp.ne.s32.totalorder %s72, %s88
    %p90 = scmp.eq.s32.totalorder %s22, 0
    %p91 = por %p89, %p90
    %p92 = scmp.le.s32.totalorder 1, %s16
    %p93 = scmp.lt.s32.totalorder %s16, 3
    %p94 = pnand %p92, %p93
    %p95 = pneg %p94
    // Predicated region
    $region9: #{normalization_forward.1} parent=5 // pred_check
      _
    $region10: #{normalization_forward.1} parent=5 // pred_check_branch
      %97 = sbr.rel (%p94) target = $region12
    $region11: #{normalization_forward.1} parent=5 // pred_region
      %s98 = ssub.s32 %s16, 1
    $region12: #{normalization_forward.1} parent=5 // pred_fallthru
      _
    %p99 = scmp.lt.s32.totalorder %s16, 2
    // Predicated region
    $region13: #{normalization_forward.1} parent=5 // pred_check
      %p100 = pneg %p99
    $region14: #{normalization_forward.1} parent=5 // pred_check_branch
      %102 = sbr.rel (%p100) target = $region16
    $region15: #{normalization_forward.1} parent=5 // pred_region
      // Predicated region
      $region17: #{normalization_forward.1} parent=15 // pred_check
        %p103 = pneg %p50
      $region18: #{normalization_forward.1} parent=15 // pred_check_branch
        %105 = sbr.rel (%p103) target = $region20
      $region19: #{normalization_forward.1} parent=15 // pred_region
        %s106 = smul.u32 2, %s24
        %p107 = scmp.lt.s32.totalorder %s23, 1
        %s108 = scalar_select %p107, %s23, 1
        %p109 = scmp.lt.s32.totalorder %s106, 1
        %s110 = scalar_select %p109, %s106, 1
        %s111 = smul.addr %s108, 2
        %s112 = sadd.s32 %s110, %s111
        %s113 = smul.addr %s112, 4
        %s114 = scalar_lea.vmem %s1, %s113
        %s115 = smul.u32 2, %s24
      $region20: #{normalization_forward.1} parent=15 // pred_fallthru
        _
    $region16: #{normalization_forward.1} parent=5 // pred_fallthru
      _
    %p116 = scmp.le.s32.totalorder 1, %s16
    %p117 = scmp.lt.s32.totalorder %s16, 3
    %p118 = pnand %p116, %p117
    %p119 = pneg %p118
    // Predicated region
    $region21: #{normalization_forward.1} parent=5 // pred_check
      _
    $region22: #{normalization_forward.1} parent=5 // pred_check_branch
      %121 = sbr.rel (%p118) target = $region24
    $region23: #{normalization_forward.1} parent=5 // pred_region
      %s122 = ssub.s32 %s16, 1
      %s123 = smul.u32 2, %s26
      %p124 = scmp.lt.s32.totalorder %s25, 1
      %s125 = scalar_select %p124, %s25, 1
      %p126 = scmp.lt.s32.totalorder %s123, 1
      %s127 = scalar_select %p126, %s123, 1
      %s128 = smul.addr %s125, 2
      %s129 = sadd.s32 %s127, %s128
      %s130 = smul.addr %s129, 4
      %s131 = scalar_lea.vmem %s1, %s130
      %p132 = pneg %p56
      %p133 = pneg %p53
      %p134 = pneg %p84
      %p135 = pneg %p81
      %s136 = smul.u32 2, %s26
      %p137 = scmp.lt.s32.totalorder %s25, 1
      %s138 = scalar_select %p137, %s25, 1
      %p139 = scmp.lt.s32.totalorder %s136, 1
      %s140 = scalar_select %p139, %s136, 1
      %s141 = smul.addr %s138, 2
      %s142 = sadd.s32 %s140, %s141
      %s143 = smul.addr %s142, 4
      %s144 = scalar_lea.vmem %s2, %s143
      %s145 = smul.u32 2, %s26
      %p146 = scmp.lt.s32.totalorder %s25, 1
      %s147 = scalar_select %p146, %s25, 1
      %p148 = scmp.lt.s32.totalorder %s145, 1
      %s149 = scalar_select %p148, %s145, 1
      %s150 = smul.addr %s147, 2
      %s151 = sadd.s32 %s149, %s150
      %s152 = smul.addr %s151, 4
      %s153 = scalar_lea.vmem %s1, %s152
      %s154 = smul.u32 2, %s26
      %s155 = smul.u32 2, %s26
      %p156 = scmp.lt.s32.totalorder %s25, 1
      %s157 = scalar_select %p156, %s25, 1
      %p158 = scmp.lt.s32.totalorder %s155, 1
      %s159 = scalar_select %p158, %s155, 1
      %s160 = smul.addr %s157, 2
      %s161 = sadd.s32 %s159, %s160
      %s162 = smul.addr %s161, 4
      %s163 = scalar_lea.vmem %s2, %s162
      %s164 = smul.u32 2, %s26
      %v165 = vld [vmem:[%s153] sm:$0xff]
      %v166 = vmul.f32 %v165, %v165
      %168 = vst [vmem:[#allocation1] ss:$2 sm:$0xff] %v166
      %v169 = vld.sshfl [vmem:[#allocation1] sm:$0xff pattern:$0x75316420]
      %v170 = vld.sshfl [vmem:[#allocation1 + $0x8] sm:$0xff pattern:$0x75316420]
      %vm173 = vcmask 1043456
      %v174 = vsel %vm173, %v169, 0.0
      %v175 = vrot.slane %v174, 4
      %v176 = vadd.f32 %v174, %v175
      %v177 = vrot.slane %v176, 2
      %v178 = vadd.f32 %v176, %v177
      %v179 = vrot.slane %v178, 1
      %v180 = vadd.f32 %v178, %v179
      %v181 = vsel %vm173, %v170, 0.0
      %v182 = vrot.slane %v181, 4
      %v183 = vadd.f32 %v181, %v182
      %v184 = vrot.slane %v183, 2
      %v185 = vadd.f32 %v183, %v184
      %v186 = vrot.slane %v185, 1
      %v187 = vadd.f32 %v185, %v186
      %v188 = vmax.f32 %v180, 1e-24
      %v189 = vmax.f32 %v187, 1e-24
      %v190 = vrsqrt.pop %v188
      %v191 = vmul.f32 %v190, %v188
      %v192 = vmul.f32 %v191, %v190
      %v193 = vmul.f32 0.5, %v192
      %v194 = vsub.f32 1.5, %v193
      %v195 = vmul.f32 %v190, %v194
      %vm196 = vweird.f32 %v188
      %vm197 = vweird.f32 %v190
      %vm198 = vmor %vm196, %vm197
      %v199 = vsel %vm198, %v190, %v195
      %v200 = vrsqrt.pop %v189
      %v201 = vmul.f32 %v200, %v189
      %v202 = vmul.f32 %v201, %v200
      %v203 = vmul.f32 0.5, %v202
      %v204 = vsub.f32 1.5, %v203
      %v205 = vmul.f32 %v200, %v204
      %vm206 = vweird.f32 %v189
      %vm207 = vweird.f32 %v200
      %vm208 = vmor %vm206, %vm207
      %v209 = vsel %vm208, %v200, %v205
      %s210 = sld [smem:[#allocation3]]
      %v211 = vstv %s210
      %v212 = vmul.f32 %v211, %v199
      %v213 = vmul.f32 %v211, %v209
      %v216 = vrot.slane %v213, 4
      %v217 = vsel %vm173, %v212, %v216
      %v219 = vmul.f32 %v165, %v217
      %s220 = sld [smem:[#allocation3 + $0x1]]
      %v221 = vstv %s220
      %v222 = vadd.f32 %v219, %v221
      %223 = vst [vmem:[%s163] sm:$0xff] %v222
      %s224 = smul.u32 2, %s26
      %p225 = scmp.lt.s32.totalorder %s25, 1
      %s226 = scalar_select %p225, %s25, 1
      %p227 = scmp.lt.s32.totalorder %s224, 1
      %s228 = scalar_select %p227, %s224, 1
      %s229 = smul.addr %s226, 2
      %s230 = sadd.s32 %s228, %s229
      %s231 = smul.addr %s230, 4
      %s232 = scalar_lea.vmem %s2, %s231
      // Predicated region
      $region25: #{normalization_forward.1} parent=23 // pred_check
        %p233 = pneg %p81
      $region26: #{normalization_forward.1} parent=23 // pred_check_branch
        %235 = sbr.rel (%p233) target = $region28
      $region27: #{normalization_forward.1} parent=23 // pred_region
        %s236 = smul.u32 2, %s26
      $region28: #{normalization_forward.1} parent=23 // pred_fallthru
        _
    $region24: #{normalization_forward.1} parent=5 // pred_fallthru
      _
    %p237 = scmp.le.s32.totalorder 2, %s16
    // Predicated region
    $region29: #{normalization_forward.1} parent=5 // pred_check
      %p238 = pneg %p237
    $region30: #{normalization_forward.1} parent=5 // pred_check_branch
      %240 = sbr.rel (%p238) target = $region32
    $region31: #{normalization_forward.1} parent=5 // pred_region
      %s241 = ssub.s32 %s16, 2
      // Predicated region
      $region33: #{normalization_forward.1} parent=31 // pred_check
        %p242 = pneg %p87
      $region34: #{normalization_forward.1} parent=31 // pred_check_branch
        %244 = sbr.rel (%p242) target = $region36
      $region35: #{normalization_forward.1} parent=31 // pred_region
        %s245 = smul.u32 2, %s28
        %p246 = scmp.lt.s32.totalorder %s27, 1
        %s247 = scalar_select %p246, %s27, 1
        %p248 = scmp.lt.s32.totalorder %s245, 1
        %s249 = scalar_select %p248, %s245, 1
        %s250 = smul.addr %s247, 2
        %s251 = sadd.s32 %s249, %s250
        %s252 = smul.addr %s251, 4
        %s253 = scalar_lea.vmem %s2, %s252
      $region36: #{normalization_forward.1} parent=31 // pred_fallthru
        _
    $region32: #{normalization_forward.1} parent=5 // pred_fallthru
      _
  $region6: #{normalization_forward.1} parent=0 // loop_footer
    %s20 = sadd.s32 1, %s16
  $region7: #{normalization_forward.1} parent=0 // loop_footer_branch
    %15 = sbr.rel target = $region3
  $region8: #{normalization_forward.1} parent=0 // loop_exit
    _

</llo_original>
